<compile_context>
chip_gen: v6e
topology: v6e:2x2x1
jax: 0.10.0
libtpu: 0.0.40
codegen_flags: <defaults>
</compile_context>

<pallas_src>
import jax
import jax.numpy as jnp
from jax.experimental import pallas as pl
from jax.experimental.pallas import tpu as pltpu

_LANES = 128
# 4096 rows x 128 lanes x 4 B = 2 MiB per f32 input buffer.
# 2 inputs x 2 pipeline buffers  = 8 MiB VMEM -> fits v5e/v6e/v7x scoped VMEM.
_MAX_TILE_ROWS = 4096


def _sse_kernel(yp_ref, y_ref, out_ref):
    """Accumulate sum((yp - y)^2) over row tiles into the (1, 1) output."""
    i = pl.program_id(0)

    @pl.when(i == 0)
    def _init():
        out_ref[...] = jnp.zeros_like(out_ref)

    # Cast to f32 inside the kernel (inputs arrive in their native dtype).
    d = yp_ref[...].astype(jnp.float32) - y_ref[...].astype(jnp.float32)
    out_ref[...] = out_ref[...] + jnp.sum(d * d)


def recon_loss(y_pred, y):
    """sum((y_pred - y)**2)  ==  nn.MSELoss(reduction='sum')(y_pred, y)."""
    assert y_pred.shape == y.shape, (y_pred.shape, y.shape)
    total = y_pred.size

    # Flatten to a lane-dense (rows, 128) view; tile rows in multiples of 8.
    rows = pl.cdiv(total, _LANES)
    tile_rows = min(_MAX_TILE_ROWS, pl.cdiv(rows, 8) * 8)
    rows_padded = pl.cdiv(rows, tile_rows) * tile_rows
    pad = rows_padded * _LANES - total

    flat_p = y_pred.reshape(-1)
    flat_t = y.reshape(-1)
    if pad:
        # Pad BOTH operands with zeros -> padded lanes contribute 0 to the sum.
        flat_p = jnp.pad(flat_p, (0, pad))
        flat_t = jnp.pad(flat_t, (0, pad))
    yp = flat_p.reshape(rows_padded, _LANES)
    yt = flat_t.reshape(rows_padded, _LANES)

    grid = (rows_padded // tile_rows,)
    bytes_accessed = yp.size * yp.dtype.itemsize + yt.size * yt.dtype.itemsize + 4

    out = pl.pallas_call(
        _sse_kernel,
        out_shape=jax.ShapeDtypeStruct((1, 1), jnp.float32),
        grid=grid,
        in_specs=[
            pl.BlockSpec((tile_rows, _LANES), lambda i: (i, 0)),
            pl.BlockSpec((tile_rows, _LANES), lambda i: (i, 0)),
        ],
        out_specs=pl.BlockSpec((1, 1), lambda i: (0, 0)),
        compiler_params=pltpu.CompilerParams(
            dimension_semantics=("arbitrary",),   # reduction axis
            vmem_limit_bytes=32 * 1024 * 1024,    # safe on v5e/v6e/v7x
        ),
        cost_estimate=pl.CostEstimate(
            flops=3 * rows_padded * _LANES,       # sub + mul + add per element
            transcendentals=0,
            bytes_accessed=bytes_accessed,
        ),
    )(yp, yt)
    # TODO(synk): on v7x, a leading "parallel" grid axis over the 2 TensorCores
    # with per-core partial sums would give ~2x for very large inputs.
    return out[0, 0]


if __name__ == "__main__":
    key = jax.random.PRNGKey(0)
    k_pred, k_true = jax.random.split(key)

    # Reconstruction-style inputs: (batch=2, channels=4, H=16, W=16).
    shape = (2, 4, 16, 16)
    y_pred = jax.random.normal(k_pred, shape, dtype=jnp.float32)
    y = jax.random.normal(k_true, shape, dtype=jnp.float32)

    loss = recon_loss(y_pred, y)
    jax.block_until_ready(loss)

    # Pure-JAX reference: sum of squared errors (MSELoss reduction='sum').
    ref = jnp.sum((y_pred - y) ** 2)
    assert jnp.allclose(loss, ref, rtol=1e-5, atol=1e-4), (loss, ref)

    print("KERNEL_OK")
</pallas_src>

<mosaic_0001>
module attributes {stable_mosaic.version = 11 : i64} {
  func.func @_sse_kernel(%arg0: i32, %arg1: memref<16x128xf32, #tpu.memory_space<vmem>>, %arg2: memref<16x128xf32, #tpu.memory_space<vmem>>, %arg3: memref<1x1xf32, #tpu.memory_space<vmem>>) attributes {dimension_semantics = [#tpu.dimension_semantics<arbitrary>], iteration_bounds = array<i64: 1>, scalar_prefetch = 0 : i64, scratch_operands = 0 : i64, tpu.core_type = #tpu.core_type<tc>, window_params = [{transform_indices = @transform_0, window_bounds = array<i64: 16, 128>}, {transform_indices = @transform_1, window_bounds = array<i64: 16, 128>}, {pipeline_mode = #tpu.pipeline_mode<synchronous>, transform_indices = @transform_2, window_bounds = array<i64: 1, 1>}]} {
    %c0_i32 = arith.constant 0 : i32
    %0 = arith.cmpi eq, %arg0, %c0_i32 : i32
    %1 = arith.extui %0 : i1 to i32
    %c0_i32_0 = arith.constant 0 : i32
    %2 = arith.cmpi ne, %1, %c0_i32_0 : i32
    scf.if %2 {
      %cst_8 = arith.constant 0.000000e+00 : f32
      %15 = vector.broadcast %cst_8 : f32 to vector<1x1xf32>
      %c0_9 = arith.constant 0 : index
      %c0_10 = arith.constant 0 : index
      %16 = vector.load %arg3[%c0_9, %c0_10] : memref<1x1xf32, #tpu.memory_space<vmem>>, vector<1x1xf32>
      tpu.vector_store %arg3[%c0_9, %c0_10], %15 {strides = array<i32>} : memref<1x1xf32, #tpu.memory_space<vmem>>, vector<1x1xf32>,
    } else {
    }
    %c0 = arith.constant 0 : index
    %c0_1 = arith.constant 0 : index
    %3 = vector.load %arg1[%c0, %c0_1] : memref<16x128xf32, #tpu.memory_space<vmem>>, vector<16x128xf32>
    %c0_2 = arith.constant 0 : index
    %c0_3 = arith.constant 0 : index
    %4 = vector.load %arg2[%c0_2, %c0_3] : memref<16x128xf32, #tpu.memory_space<vmem>>, vector<16x128xf32>
    %5 = arith.subf %3, %4 : vector<16x128xf32>
    %c0_4 = arith.constant 0 : index
    %c0_5 = arith.constant 0 : index
    %6 = vector.load %arg3[%c0_4, %c0_5] : memref<1x1xf32, #tpu.memory_space<vmem>>, vector<1x1xf32>
    %7 = arith.mulf %5, %5 : vector<16x128xf32>
    %8 = vector.shape_cast %7 : vector<16x128xf32> to vector<1x16x128xf32>
    %cst = arith.constant dense<0.000000e+00> : vector<1xf32>
    %9 = vector.multi_reduction <add>, %8, %cst [1, 2] : vector<1x16x128xf32> to vector<1xf32>
    %10 = vector.shape_cast %9 : vector<1xf32> to vector<1x1x1xf32>
    %11 = vector.extract %10[0, 0, 0] : f32 from vector<1x1x1xf32>
    %12 = vector.broadcast %11 : f32 to vector<1x1xf32>
    %13 = arith.addf %6, %12 : vector<1x1xf32>
    %c0_6 = arith.constant 0 : index
    %c0_7 = arith.constant 0 : index
    %14 = vector.load %arg3[%c0_6, %c0_7] : memref<1x1xf32, #tpu.memory_space<vmem>>, vector<1x1xf32>
    tpu.vector_store %arg3[%c0_6, %c0_7], %13 {strides = array<i32>} : memref<1x1xf32, #tpu.memory_space<vmem>>, vector<1x1xf32>,
    return
  }
  func.func @transform_0(%arg0: i32) -> (i32, i32) {
    %c0_i32 = arith.constant 0 : i32
    %c0_i32_0 = arith.constant 0 : i32
    return %arg0, %c0_i32 : i32, i32
  }
  func.func @transform_1(%arg0: i32) -> (i32, i32) {
    %c0_i32 = arith.constant 0 : i32
    %c0_i32_0 = arith.constant 0 : i32
    return %arg0, %c0_i32 : i32, i32
  }
  func.func @transform_2(%arg0: i32) -> (i32, i32) {
    %c0_i32 = arith.constant 0 : i32
    %c0_i32_0 = arith.constant 0 : i32
    %c0_i32_1 = arith.constant 0 : i32
    return %c0_i32, %c0_i32_0 : i32, i32
  }
}

</mosaic_0001>

<llo_original>
// kernel: tpu_custom_call.1
$region0: #{tpu_custom_call.1}
  #allocation0 [shape = 'u32[]', space=smem, size = 0x4, offset = 0x4, fixed_abs, tag = 'smem constant byte address 0x4 - core index']
  #allocation1 [shape = 'u32[144,128]{1,0:T(1,128)}', space=vmem, size = 0x12000, scoped, tag = 'internal scratch']
  %s0 = inlined_call_operand.hbm [shape: f32[16,128], index: 0, kind: input, shape index: {}]
  %s1 = inlined_call_operand.hbm [shape: f32[16,128], index: 1, kind: input, shape index: {}]
  %s2 = inlined_call_operand.hbm [shape: f32[1,1], index: 2, kind: output, shape index: {}]
  %s3 = sld [smem:[#allocation0]]
  $region30: #{tpu_custom_call.1} parent=0
    _
  %s5 = ssub.s32 1, %s3
  %s6 = scalar_select 0, %s5, %s3
  $region1: #{tpu_custom_call.1} parent=0
    #allocation2 [shape = 'u8[8192]{0}', space=vmem, size = 0x2000, scoped, tag = 'input window, operand 0, single buffered']
    #allocation3 [shape = 's32[1]{0}', space=sflag, size = 0x4, scoped, tag = 'scoped memory for tpu_custom_call.1']
    #allocation4 [shape = 's32[1]{0}', space=sflag, size = 0x4, scoped, tag = 'scoped memory for tpu_custom_call.1']
    #allocation5 [shape = 'u8[8192]{0}', space=vmem, size = 0x2000, scoped, tag = 'input window, operand 1, single buffered']
    #allocation6 [shape = 's32[1]{0}', space=sflag, size = 0x4, scoped, tag = 'scoped memory for tpu_custom_call.1']
    #allocation7 [shape = 'u8[512]{0}', space=vmem, size = 0x400, scoped, tag = 'output window, operand 0, single buffered']
    %7 = vsyncpa [#allocation3], 0
    %8 = vsyncpa [#allocation6], 0
    %9 = vsyncpa [#allocation4], 0
    // Predicated region
    $region2: #{tpu_custom_call.1} parent=1 // pred_check
      _
    $region3: #{tpu_custom_call.1} parent=1 // pred_check_branch
      %11 = sbr.rel (0) target = $region5
    $region4: #{tpu_custom_call.1} parent=1 // pred_region
      %s13 = ssub.s32 256, 256
      %14 = vsyncadd [#allocation3], %s13
      %s15 = sshll.u32 [#allocation2], 4
      %s16 = int_to_ptr.vmem [resolvable:$true] %s15
      %21 = dma.hbm_to_vmem [thread:$0]  %s0, 256, %s16, [#allocation3], 128, 128, 8
    $region5: #{tpu_custom_call.1} parent=1 // pred_fallthru
      _
    // Predicated region
    $region6: #{tpu_custom_call.1} parent=1 // pred_check
      _
    $region7: #{tpu_custom_call.1} parent=1 // pred_check_branch
      %23 = sbr.rel (0) target = $region9
    $region8: #{tpu_custom_call.1} parent=1 // pred_region
      %s25 = ssub.s32 256, 256
      %26 = vsyncadd [#allocation6], %s25
      %s27 = sshll.u32 [#allocation5], 4
      %s28 = int_to_ptr.vmem [resolvable:$true] %s27
      %33 = dma.hbm_to_vmem [thread:$0]  %s1, 256, %s28, [#allocation6], 128, 128, 8
    $region9: #{tpu_custom_call.1} parent=1 // pred_fallthru
      _
    // Predicated region
    $region10: #{tpu_custom_call.1} parent=1 // pred_check
      _
    $region11: #{tpu_custom_call.1} parent=1 // pred_check_branch
      %35 = sbr.rel (0) target = $region13
    $region12: #{tpu_custom_call.1} parent=1 // pred_region
      %36 = dma.done [#allocation3], 256
    $region13: #{tpu_custom_call.1} parent=1 // pred_fallthru
      _
    // Predicated region
    $region14: #{tpu_custom_call.1} parent=1 // pred_check
      _
    $region15: #{tpu_custom_call.1} parent=1 // pred_check_branch
      %38 = sbr.rel (0) target = $region17
    $region16: #{tpu_custom_call.1} parent=1 // pred_region
      %39 = dma.done [#allocation6], 256
    $region17: #{tpu_custom_call.1} parent=1 // pred_fallthru
      _
    %p40 = scmp.eq.s32.totalorder 0, 0
    // Predicated region
    $region18: #{tpu_custom_call.1} parent=1 // pred_check
      %p41 = pneg %p40
    $region19: #{tpu_custom_call.1} parent=1 // pred_check_branch
      %43 = sbr.rel (%p41) target = $region21
    $region20: #{tpu_custom_call.1} parent=1 // pred_region
      %vm44 = vcmask 0
      %45 = vst.msk [vmem:[#allocation7] sm:$0x1] %vm44, 0.0
    $region21: #{tpu_custom_call.1} parent=1 // pred_fallthru
      _
    %v46 = vld [vmem:[#allocation2] sm:$0xff]
    %v47 = vld [vmem:[#allocation2 + $0x8] sm:$0xff]
    %v48 = vld [vmem:[#allocation5] sm:$0xff]
    %v49 = vld [vmem:[#allocation5 + $0x8] sm:$0xff]
    %v50 = vsub.f32 %v46, %v48
    %v51 = vsub.f32 %v47, %v49
    %v52 = vld [vmem:[#allocation7] sm:$0x1]
    %v53 = vmul.f32 %v50, %v50
    %v54 = vmul.f32 %v51, %v51
    %v55 = vadd.f32 %v53, %v54
    %56 = vadd.xlane.f32.xlu0 %v55
    %v57 = vpop.xlane.xlu0 %56
    %v58 = vrot.slane %v57, 4
    %v59 = vadd.f32 %v57, %v58
    %v60 = vrot.slane %v59, 2
    %v61 = vadd.f32 %v59, %v60
    %v62 = vrot.slane %v61, 1
    %v63 = vadd.f32 %v61, %v62
    %s64 = vtos %v63
    %v65 = vstv %s64
    %v66 = vadd.f32 %v52, %v65
    %vm67 = vcmask 0
    %68 = vst.msk [vmem:[#allocation7] sm:$0x1] %vm67, %v66
    // Predicated region
    $region22: #{tpu_custom_call.1} parent=1 // pred_check
      _
    $region23: #{tpu_custom_call.1} parent=1 // pred_check_branch
      %70 = sbr.rel (0) target = $region25
    $region24: #{tpu_custom_call.1} parent=1 // pred_region
      %s72 = ssub.s32 16, 16
      %73 = vsyncadd [#allocation4], %s72
      %s75 = sshll.u32 [#allocation7], 4
      %s76 = int_to_ptr.vmem [resolvable:$true] %s75
      %78 = dma.vmem_to_hbm [thread:$0]  %s76, 16, %s2, [#allocation4]
    $region25: #{tpu_custom_call.1} parent=1 // pred_fallthru
      _
    // Predicated region
    $region26: #{tpu_custom_call.1} parent=1 // pred_check
      _
    $region27: #{tpu_custom_call.1} parent=1 // pred_check_branch
      %80 = sbr.rel (0) target = $region29
    $region28: #{tpu_custom_call.1} parent=1 // pred_region
      %81 = dma.done [#allocation4], 16
    $region29: #{tpu_custom_call.1} parent=1 // pred_fallthru
      _
    %82 = vsyncpa [#allocation3], 1
    %83 = vsyncpa [#allocation6], 1
    %84 = vsyncpa [#allocation4], 1

</llo_original>
